<compile_context>
chip_gen: v6e
topology: v6e:2x2x1
jax: 0.10.0
libtpu: 0.0.40
codegen_flags: <defaults>
</compile_context>

<pallas_src>
import functools
import math

import jax
import jax.numpy as jnp
from jax.experimental import pallas as pl
from jax.experimental.pallas import tpu as pltpu


def _round_up(x: int, m: int) -> int:
    return ((x + m - 1) // m) * m


def _sublane_mult(dtype) -> int:
    return {4: 8, 2: 16, 1: 32}.get(jnp.dtype(dtype).itemsize, 8)


@functools.lru_cache(maxsize=None)
def _vmem_cap_bytes() -> int:
    """Per-core VMEM budget: physical capacity minus ~25% headroom."""
    try:
        cap = int(pltpu.get_tpu_info().vmem_capacity_bytes)
    except Exception:  # hardware probe only; fall back to the smallest (v7x) size
        cap = 64 << 20
    return max(16 << 20, int(cap * 0.75))


@functools.lru_cache(maxsize=None)
def _buffered1_constructible() -> bool:
    """One-time feature probe: can we build a single-buffered BlockSpec?"""
    try:
        pl.BlockSpec((8, 128), lambda i: (0, 0), pipeline_mode=pl.Buffered(1))
        return True
    except Exception:
        return False


# Flips to False the first time Mosaic rejects Buffered(1) at lowering time.
_BUFFERED1_RUNTIME_OK = True


def _mlp_kernel(x_ref, *refs, num_layers: int):
    """refs = (w0, b0, w1, b1, ..., w_{L-1}, b_{L-1}, out_ref)."""
    out_ref = refs[-1]
    params = refs[:-1]

    compute_dtype = x_ref.dtype
    h = x_ref[...]                                  # native dtype -> MXU directly
    for i in range(num_layers):
        w = params[2 * i][...]                      # no upcast of MXU operands
        b = params[2 * i + 1][...].astype(jnp.float32)
        acc = jnp.dot(h, w, preferred_element_type=jnp.float32) + b
        if i < num_layers - 1:
            h = jnp.maximum(acc, 0.0).astype(compute_dtype)   # ReLU in f32
        else:
            out_ref[...] = acc.astype(out_ref.dtype)


@functools.partial(
    jax.jit,
    static_argnames=("n_heads", "n_features", "batch_tile",
                     "single_buffer_params", "vmem_cap"),
)
def _dnn_forward_impl(x, weights, biases, *, n_heads, n_features, batch_tile,
                      single_buffer_params, vmem_cap):
    batch, in_size = x.shape
    num_layers = len(weights)
    out_dim = n_heads * n_features
    assert num_layers >= 1
    assert weights[-1].shape[1] == out_dim, (weights[-1].shape, out_dim)

    # Fail loudly on a malformed parameter list (chained dims must match).
    prev = in_size
    for li, (w, b) in enumerate(zip(weights, biases)):
        assert w.shape[0] == prev, f"layer {li}: fan_in {w.shape[0]} != {prev}"
        assert math.prod(b.shape) == w.shape[1], f"layer {li}: bias/weight mismatch"
        prev = w.shape[1]

    itemsize = jnp.dtype(x.dtype).itemsize
    sub = _sublane_mult(x.dtype)

    # ---- parameter prep: lane-dense hidden widths, UNPADDED final layer ----
    in_size_p = _round_up(in_size, sub)             # sublane-align first-layer K
    padded_w, padded_b, dims_p = [], [], [in_size_p]
    prev_pad = in_size_p - in_size
    for li, (w, b) in enumerate(zip(weights, biases)):
        n = w.shape[1]
        n_p = _round_up(n, 128) if li < num_layers - 1 else n
        if prev_pad or (n_p - n):
            w = jnp.pad(w, ((0, prev_pad), (0, n_p - n)))
        b2 = jnp.reshape(b, (1, -1))
        if n_p - n:
            b2 = jnp.pad(b2, ((0, 0), (0, n_p - n)))
        padded_w.append(w)
        padded_b.append(b2)
        dims_p.append(n_p)
        prev_pad = n_p - n

    # ---- batch tiling: fat tiles, minimal padding, even grid for megacore ---
    b_aligned = _round_up(batch, sub)
    eff_tile = max(sub, min(batch_tile, b_aligned))
    grid_n = -(-b_aligned // eff_tile)
    if grid_n == 1 and b_aligned >= 256:
        grid_n = 2                                  # split across 2 TensorCores
    if grid_n > 1 and grid_n % 2:
        grid_n += 1                                 # balanced grid on v7x (2 TCs)
    tile = _round_up(-(-b_aligned // grid_n), sub)
    padded_batch = grid_n * tile
    row_pad = padded_batch - batch
    col_pad = in_size_p - in_size
    if row_pad or col_pad:                          # single fused pad (often skipped)
        x = jnp.pad(x, ((0, row_pad), (0, col_pad)))

    # ---- BlockSpecs ---------------------------------------------------------
    x_spec = pl.BlockSpec((tile, in_size_p), lambda i: (i, 0))
    out_spec = pl.BlockSpec((tile, out_dim), lambda i: (i, 0))

    param_mode = pl.Buffered(1) if single_buffer_params else None
    params, param_specs = [], []
    for w, b in zip(padded_w, padded_b):
        for p in (w, b):
            if param_mode is None:
                param_specs.append(pl.BlockSpec(p.shape, lambda i: (0, 0)))
            else:
                param_specs.append(
                    pl.BlockSpec(p.shape, lambda i: (0, 0), pipeline_mode=param_mode))
            params.append(p)

    # ---- VMEM budget & cost estimate ---------------------------------------
    param_bytes = sum(math.prod(p.shape) * jnp.dtype(p.dtype).itemsize
                      for p in params)
    act_bytes = 2 * tile * (in_size_p + out_dim) * itemsize    # dbl-buffered x/out
    est = (1 if single_buffer_params else 2) * param_bytes + act_bytes
    vmem_limit = int(min(vmem_cap, max(16 << 20, int(1.5 * est) + (4 << 20))))

    flops = 2 * padded_batch * sum(dims_p[i] * dims_p[i + 1]
                                   for i in range(num_layers))
    bytes_accessed = (padded_batch * (in_size_p + out_dim)) * itemsize + param_bytes
    cost = pl.CostEstimate(flops=flops, transcendentals=0,
                           bytes_accessed=bytes_accessed)

    y = pl.pallas_call(
        functools.partial(_mlp_kernel, num_layers=num_layers),
        out_shape=jax.ShapeDtypeStruct((padded_batch, out_dim), x.dtype),
        grid_spec=pltpu.PrefetchScalarGridSpec(
            num_scalar_prefetch=0,
            grid=(grid_n,),
            in_specs=[x_spec] + param_specs,
            out_specs=out_spec,
        ),
        compiler_params=pltpu.CompilerParams(
            dimension_semantics=("parallel",),
            vmem_limit_bytes=vmem_limit,
        ),
        cost_estimate=cost,
    )(x, *params)

    if padded_batch != batch:
        y = y[:batch]                               # only the (cheap) row slice remains
    return y.reshape(batch, n_heads, n_features)


def dnn_forward(x, weights, biases, n_heads, n_features, *, batch_tile=512):
    """Pallas implementation of DNN.forward (act_fn='relu').

    x: (batch, in_size); weights[i]: (dim_in_i, dim_out_i) (= torch weight.T);
    biases[i]: (1, dim_out_i) or (dim_out_i,).  Returns (batch, n_heads, n_features).
    """
    global _BUFFERED1_RUNTIME_OK
    weights = tuple(weights)
    biases = tuple(biases)

    # Decide (in the wrapper, with concrete shapes) whether single-buffering the
    # grid-invariant weights is worth attempting: only when the padded weight
    # stack is big enough for the VMEM saving to matter.
    sub = _sublane_mult(x.dtype)
    prev = _round_up(x.shape[1], sub)
    padded_param_bytes = 0
    for li, w in enumerate(weights):
        n = w.shape[1]
        n_p = _round_up(n, 128) if li < len(weights) - 1 else n
        padded_param_bytes += (prev * n_p + n_p) * jnp.dtype(w.dtype).itemsize
        prev = n_p
    want_single = (padded_param_bytes > (2 << 20)
                   and _BUFFERED1_RUNTIME_OK
                   and _buffered1_constructible())

    kwargs = dict(n_heads=n_heads, n_features=n_features,
                  batch_tile=int(batch_tile), vmem_cap=_vmem_cap_bytes())
    if want_single:
        try:
            return _dnn_forward_impl(x, weights, biases,
                                     single_buffer_params=True, **kwargs)
        except pltpu.LoweringException:
            _BUFFERED1_RUNTIME_OK = False           # cache: never retry Buffered(1)
    return _dnn_forward_impl(x, weights, biases,
                             single_buffer_params=False, **kwargs)


def init_dnn_params(key, in_size, hidden_size, depth, n_heads, n_features):
    """Deterministic init mirroring torch.nn.Linear (uniform +/- 1/sqrt(fan_in)).

    Weights are returned as (fan_in, fan_out) = torch weight.T so the kernel
    can do x @ W directly.
    """
    dims = [in_size] + [hidden_size] * depth + [n_heads * n_features]
    weights, biases = [], []
    for i in range(len(dims) - 1):
        fan_in, fan_out = dims[i], dims[i + 1]
        key, kw, kb = jax.random.split(key, 3)
        bound = 1.0 / jnp.sqrt(fan_in)
        weights.append(jax.random.uniform(kw, (fan_in, fan_out), jnp.float32,
                                          -bound, bound))
        biases.append(jax.random.uniform(kb, (1, fan_out), jnp.float32,
                                         -bound, bound))
    return weights, biases


def dnn_reference(x, weights, biases, n_heads, n_features):
    h = x
    for i, (w, b) in enumerate(zip(weights, biases)):
        h = h @ w + jnp.reshape(b, (1, -1))
        if i < len(weights) - 1:
            h = jnp.maximum(h, 0.0)
    return h.reshape(-1, n_heads, n_features)


if __name__ == "__main__":
    # Small shapes consistent with the module: in=16, hidden=32, depth=3,
    # n_heads=4, n_features=8  ->  out_size = 32.
    in_size, hidden_size, depth = 16, 32, 3
    n_heads, n_features = 4, 8

    key = jax.random.PRNGKey(0)
    key, kp = jax.random.split(key)
    weights, biases = init_dnn_params(kp, in_size, hidden_size, depth,
                                      n_heads, n_features)

    # Case 1: tiny batch, single tile, no padding at all.
    key, kx = jax.random.split(key)
    x_small = jax.random.normal(kx, (8, in_size), dtype=jnp.float32)
    out = jax.block_until_ready(
        dnn_forward(x_small, weights, biases, n_heads, n_features))
    ref = dnn_reference(x_small, weights, biases, n_heads, n_features)
    assert out.shape == (8, n_heads, n_features), out.shape
    assert jnp.allclose(out, ref, atol=1e-4, rtol=1e-4), "mismatch (case 1)"

    # Case 2: multi-tile grid (even grid_n) + batch tail padding path.
    key, kx = jax.random.split(key)
    x_big = jax.random.normal(kx, (300, in_size), dtype=jnp.float32)
    out = jax.block_until_ready(
        dnn_forward(x_big, weights, biases, n_heads, n_features, batch_tile=128))
    ref = dnn_reference(x_big, weights, biases, n_heads, n_features)
    assert out.shape == (300, n_heads, n_features), out.shape
    assert jnp.allclose(out, ref, atol=1e-4, rtol=1e-4), "mismatch (case 2)"

    # Case 3: lane-dense output (out_dim == 128) + default fat batch tile.
    n_heads2, n_features2 = 8, 16
    key, kp2 = jax.random.split(key)
    weights2, biases2 = init_dnn_params(kp2, in_size, hidden_size, depth,
                                        n_heads2, n_features2)
    key, kx = jax.random.split(key)
    x_mid = jax.random.normal(kx, (260, in_size), dtype=jnp.float32)
    out = jax.block_until_ready(
        dnn_forward(x_mid, weights2, biases2, n_heads2, n_features2))
    ref = dnn_reference(x_mid, weights2, biases2, n_heads2, n_features2)
    assert out.shape == (260, n_heads2, n_features2), out.shape
    assert jnp.allclose(out, ref, atol=1e-4, rtol=1e-4), "mismatch (case 3)"

    print("KERNEL_OK")
</pallas_src>

<mosaic_0001>
module attributes {stable_mosaic.version = 11 : i64} {
  func.func @_mlp_kernel(%arg0: i32, %arg1: memref<8x16xf32, #tpu.memory_space<vmem>>, %arg2: memref<16x128xf32, #tpu.memory_space<vmem>>, %arg3: memref<1x128xf32, #tpu.memory_space<vmem>>, %arg4: memref<128x128xf32, #tpu.memory_space<vmem>>, %arg5: memref<1x128xf32, #tpu.memory_space<vmem>>, %arg6: memref<128x128xf32, #tpu.memory_space<vmem>>, %arg7: memref<1x128xf32, #tpu.memory_space<vmem>>, %arg8: memref<128x32xf32, #tpu.memory_space<vmem>>, %arg9: memref<1x32xf32, #tpu.memory_space<vmem>>, %arg10: memref<8x32xf32, #tpu.memory_space<vmem>>) attributes {dimension_semantics = [#tpu.dimension_semantics<parallel>], iteration_bounds = array<i64: 1>, scalar_prefetch = 0 : i64, scratch_operands = 0 : i64, tpu.core_type = #tpu.core_type<tc>, window_params = [{transform_indices = @transform_0, window_bounds = array<i64: 8, 16>}, {pipeline_mode = #tpu.pipeline_mode<synchronous>, transform_indices = @transform_1, window_bounds = array<i64: 16, 128>}, {pipeline_mode = #tpu.pipeline_mode<synchronous>, transform_indices = @transform_2, window_bounds = array<i64: 1, 128>}, {pipeline_mode = #tpu.pipeline_mode<synchronous>, transform_indices = @transform_3, window_bounds = array<i64: 128, 128>}, {pipeline_mode = #tpu.pipeline_mode<synchronous>, transform_indices = @transform_4, window_bounds = array<i64: 1, 128>}, {pipeline_mode = #tpu.pipeline_mode<synchronous>, transform_indices = @transform_5, window_bounds = array<i64: 128, 128>}, {pipeline_mode = #tpu.pipeline_mode<synchronous>, transform_indices = @transform_6, window_bounds = array<i64: 1, 128>}, {pipeline_mode = #tpu.pipeline_mode<synchronous>, transform_indices = @transform_7, window_bounds = array<i64: 128, 32>}, {pipeline_mode = #tpu.pipeline_mode<synchronous>, transform_indices = @transform_8, window_bounds = array<i64: 1, 32>}, {transform_indices = @transform_9, window_bounds = array<i64: 8, 32>}]} {
    %c0 = arith.constant 0 : index
    %c0_0 = arith.constant 0 : index
    %0 = vector.load %arg1[%c0, %c0_0] : memref<8x16xf32, #tpu.memory_space<vmem>>, vector<8x16xf32>
    %c0_1 = arith.constant 0 : index
    %c0_2 = arith.constant 0 : index
    %1 = vector.load %arg2[%c0_1, %c0_2] : memref<16x128xf32, #tpu.memory_space<vmem>>, vector<16x128xf32>
    %c0_3 = arith.constant 0 : index
    %c0_4 = arith.constant 0 : index
    %2 = vector.load %arg3[%c0_3, %c0_4] : memref<1x128xf32, #tpu.memory_space<vmem>>, vector<1x128xf32>
    %cst = arith.constant dense<0.000000e+00> : vector<8x128xf32>
    %3 = tpu.matmul %0, %1, %cst {dimension_numbers = #tpu.dot_dimension_numbers<[1], [0], [0], [1], [0, 0, 1, 1], [], []>} : vector<8x16xf32>, vector<16x128xf32>, vector<8x128xf32> -> vector<8x128xf32>
    %4 = vector.broadcast %2 : vector<1x128xf32> to vector<8x128xf32>
    %5 = arith.addf %3, %4 : vector<8x128xf32>
    %cst_5 = arith.constant 0.000000e+00 : f32
    %6 = vector.broadcast %cst_5 : f32 to vector<8x128xf32>
    %7 = arith.maximumf %5, %6 : vector<8x128xf32>
    %c0_6 = arith.constant 0 : index
    %c0_7 = arith.constant 0 : index
    %8 = vector.load %arg4[%c0_6, %c0_7] : memref<128x128xf32, #tpu.memory_space<vmem>>, vector<128x128xf32>
    %c0_8 = arith.constant 0 : index
    %c0_9 = arith.constant 0 : index
    %9 = vector.load %arg5[%c0_8, %c0_9] : memref<1x128xf32, #tpu.memory_space<vmem>>, vector<1x128xf32>
    %cst_10 = arith.constant dense<0.000000e+00> : vector<8x128xf32>
    %10 = tpu.matmul %7, %8, %cst_10 {dimension_numbers = #tpu.dot_dimension_numbers<[1], [0], [0], [1], [0, 0, 1, 1], [], []>} : vector<8x128xf32>, vector<128x128xf32>, vector<8x128xf32> -> vector<8x128xf32>
    %11 = vector.broadcast %9 : vector<1x128xf32> to vector<8x128xf32>
    %12 = arith.addf %10, %11 : vector<8x128xf32>
    %cst_11 = arith.constant 0.000000e+00 : f32
    %13 = vector.broadcast %cst_11 : f32 to vector<8x128xf32>
    %14 = arith.maximumf %12, %13 : vector<8x128xf32>
    %c0_12 = arith.constant 0 : index
    %c0_13 = arith.constant 0 : index
    %15 = vector.load %arg6[%c0_12, %c0_13] : memref<128x128xf32, #tpu.memory_space<vmem>>, vector<128x128xf32>
    %c0_14 = arith.constant 0 : index
    %c0_15 = arith.constant 0 : index
    %16 = vector.load %arg7[%c0_14, %c0_15] : memref<1x128xf32, #tpu.memory_space<vmem>>, vector<1x128xf32>
    %cst_16 = arith.constant dense<0.000000e+00> : vector<8x128xf32>
    %17 = tpu.matmul %14, %15, %cst_16 {dimension_numbers = #tpu.dot_dimension_numbers<[1], [0], [0], [1], [0, 0, 1, 1], [], []>} : vector<8x128xf32>, vector<128x128xf32>, vector<8x128xf32> -> vector<8x128xf32>
    %18 = vector.broadcast %16 : vector<1x128xf32> to vector<8x128xf32>
    %19 = arith.addf %17, %18 : vector<8x128xf32>
    %cst_17 = arith.constant 0.000000e+00 : f32
    %20 = vector.broadcast %cst_17 : f32 to vector<8x128xf32>
    %21 = arith.maximumf %19, %20 : vector<8x128xf32>
    %c0_18 = arith.constant 0 : index
    %c0_19 = arith.constant 0 : index
    %22 = vector.load %arg8[%c0_18, %c0_19] : memref<128x32xf32, #tpu.memory_space<vmem>>, vector<128x32xf32>
    %c0_20 = arith.constant 0 : index
    %c0_21 = arith.constant 0 : index
    %23 = vector.load %arg9[%c0_20, %c0_21] : memref<1x32xf32, #tpu.memory_space<vmem>>, vector<1x32xf32>
    %cst_22 = arith.constant dense<0.000000e+00> : vector<8x32xf32>
    %24 = tpu.matmul %21, %22, %cst_22 {dimension_numbers = #tpu.dot_dimension_numbers<[1], [0], [0], [1], [0, 0, 1, 1], [], []>} : vector<8x128xf32>, vector<128x32xf32>, vector<8x32xf32> -> vector<8x32xf32>
    %25 = vector.broadcast %23 : vector<1x32xf32> to vector<8x32xf32>
    %26 = arith.addf %24, %25 : vector<8x32xf32>
    %c0_23 = arith.constant 0 : index
    %c0_24 = arith.constant 0 : index
    %27 = vector.load %arg10[%c0_23, %c0_24] : memref<8x32xf32, #tpu.memory_space<vmem>>, vector<8x32xf32>
    tpu.vector_store %arg10[%c0_23, %c0_24], %26 {strides = array<i32>} : memref<8x32xf32, #tpu.memory_space<vmem>>, vector<8x32xf32>,
    return
  }
  func.func @transform_0(%arg0: i32) -> (i32, i32) {
    %c0_i32 = arith.constant 0 : i32
    %c0_i32_0 = arith.constant 0 : i32
    return %arg0, %c0_i32 : i32, i32
  }
  func.func @transform_1(%arg0: i32) -> (i32, i32) {
    %c0_i32 = arith.constant 0 : i32
    %c0_i32_0 = arith.constant 0 : i32
    %c0_i32_1 = arith.constant 0 : i32
    return %c0_i32, %c0_i32_0 : i32, i32
  }
  func.func @transform_2(%arg0: i32) -> (i32, i32) {
    %c0_i32 = arith.constant 0 : i32
    %c0_i32_0 = arith.constant 0 : i32
    %c0_i32_1 = arith.constant 0 : i32
    return %c0_i32, %c0_i32_0 : i32, i32
  }
  func.func @transform_3(%arg0: i32) -> (i32, i32) {
    %c0_i32 = arith.constant 0 : i32
    %c0_i32_0 = arith.constant 0 : i32
    %c0_i32_1 = arith.constant 0 : i32
    return %c0_i32, %c0_i32_0 : i32, i32
  }
  func.func @transform_4(%arg0: i32) -> (i32, i32) {
    %c0_i32 = arith.constant 0 : i32
    %c0_i32_0 = arith.constant 0 : i32
    %c0_i32_1 = arith.constant 0 : i32
    return %c0_i32, %c0_i32_0 : i32, i32
  }
  func.func @transform_5(%arg0: i32) -> (i32, i32) {
    %c0_i32 = arith.constant 0 : i32
    %c0_i32_0 = arith.constant 0 : i32
    %c0_i32_1 = arith.constant 0 : i32
    return %c0_i32, %c0_i32_0 : i32, i32
  }
  func.func @transform_6(%arg0: i32) -> (i32, i32) {
    %c0_i32 = arith.constant 0 : i32
    %c0_i32_0 = arith.constant 0 : i32
    %c0_i32_1 = arith.constant 0 : i32
    return %c0_i32, %c0_i32_0 : i32, i32
  }
  func.func @transform_7(%arg0: i32) -> (i32, i32) {
    %c0_i32 = arith.constant 0 : i32
    %c0_i32_0 = arith.constant 0 : i32
    %c0_i32_1 = arith.constant 0 : i32
    return %c0_i32, %c0_i32_0 : i32, i32
  }
  func.func @transform_8(%arg0: i32) -> (i32, i32) {
    %c0_i32 = arith.constant 0 : i32
    %c0_i32_0 = arith.constant 0 : i32
    %c0_i32_1 = arith.constant 0 : i32
    return %c0_i32, %c0_i32_0 : i32, i32
  }
  func.func @transform_9(%arg0: i32) -> (i32, i32) {
    %c0_i32 = arith.constant 0 : i32
    %c0_i32_0 = arith.constant 0 : i32
    return %arg0, %c0_i32 : i32, i32
  }
}

</mosaic_0001>

<llo_original>
// kernel: _dnn_forward_impl.1
$region0: #{_dnn_forward_impl.1}
  #allocation0 [shape = 'u32[]', space=smem, size = 0x4, offset = 0x4, fixed_abs, tag = 'smem constant byte address 0x4 - core index']
  #allocation1 [shape = 'u32[144,128]{1,0:T(1,128)}', space=vmem, size = 0x12000, scoped, tag = 'internal scratch']
  %s0 = inlined_call_operand.vmem [shape: f32[8,16], index: 0, kind: input, shape index: {}]
  %s1 = inlined_call_operand.vmem [shape: f32[16,128], index: 1, kind: input, shape index: {}]
  %s2 = inlined_call_operand.vmem [shape: f32[1,128], index: 2, kind: input, shape index: {}]
  %s3 = inlined_call_operand.vmem [shape: f32[128,128], index: 3, kind: input, shape index: {}]
  %s4 = inlined_call_operand.vmem [shape: f32[1,128], index: 4, kind: input, shape index: {}]
  %s5 = inlined_call_operand.vmem [shape: f32[128,128], index: 5, kind: input, shape index: {}]
  %s6 = inlined_call_operand.vmem [shape: f32[1,128], index: 6, kind: input, shape index: {}]
  %s7 = inlined_call_operand.vmem [shape: f32[128,32], index: 7, kind: input, shape index: {}]
  %s8 = inlined_call_operand.vmem [shape: f32[1,32], index: 8, kind: input, shape index: {}]
  %s9 = inlined_call_operand.vmem [shape: f32[8,32], index: 9, kind: output, shape index: {}]
  %s10 = sld [smem:[#allocation0]]
  $region46: #{_dnn_forward_impl.1} parent=0
    _
  %s12 = ssub.s32 1, %s10
  %s13 = scalar_select 0, %s12, %s10
  // Predicated region
  $region2: #{_dnn_forward_impl.1} parent=0 // pred_check
    _
  $region3: #{_dnn_forward_impl.1} parent=0 // pred_check_branch
    %15 = sbr.rel (0) target = $region5
  $region4: #{_dnn_forward_impl.1} parent=0 // pred_region
    _
  $region5: #{_dnn_forward_impl.1} parent=0 // pred_fallthru
    _
  // Predicated region
  $region6: #{_dnn_forward_impl.1} parent=0 // pred_check
    _
  $region7: #{_dnn_forward_impl.1} parent=0 // pred_check_branch
    %17 = sbr.rel (0) target = $region9
  $region8: #{_dnn_forward_impl.1} parent=0 // pred_region
    _
  $region9: #{_dnn_forward_impl.1} parent=0 // pred_fallthru
    _
  // Predicated region
  $region10: #{_dnn_forward_impl.1} parent=0 // pred_check
    _
  $region11: #{_dnn_forward_impl.1} parent=0 // pred_check_branch
    %19 = sbr.rel (0) target = $region13
  $region12: #{_dnn_forward_impl.1} parent=0 // pred_region
    _
  $region13: #{_dnn_forward_impl.1} parent=0 // pred_fallthru
    _
  // Predicated region
  $region14: #{_dnn_forward_impl.1} parent=0 // pred_check
    _
  $region15: #{_dnn_forward_impl.1} parent=0 // pred_check_branch
    %21 = sbr.rel (0) target = $region17
  $region16: #{_dnn_forward_impl.1} parent=0 // pred_region
    _
  $region17: #{_dnn_forward_impl.1} parent=0 // pred_fallthru
    _
  // Predicated region
  $region18: #{_dnn_forward_impl.1} parent=0 // pred_check
    _
  $region19: #{_dnn_forward_impl.1} parent=0 // pred_check_branch
    %23 = sbr.rel (0) target = $region21
  $region20: #{_dnn_forward_impl.1} parent=0 // pred_region
    _
  $region21: #{_dnn_forward_impl.1} parent=0 // pred_fallthru
    _
  // Predicated region
  $region22: #{_dnn_forward_impl.1} parent=0 // pred_check
    _
  $region23: #{_dnn_forward_impl.1} parent=0 // pred_check_branch
    %25 = sbr.rel (0) target = $region25
  $region24: #{_dnn_forward_impl.1} parent=0 // pred_region
    _
  $region25: #{_dnn_forward_impl.1} parent=0 // pred_fallthru
    _
  // Predicated region
  $region26: #{_dnn_forward_impl.1} parent=0 // pred_check
    _
  $region27: #{_dnn_forward_impl.1} parent=0 // pred_check_branch
    %27 = sbr.rel (0) target = $region29
  $region28: #{_dnn_forward_impl.1} parent=0 // pred_region
    _
  $region29: #{_dnn_forward_impl.1} parent=0 // pred_fallthru
    _
  // Predicated region
  $region30: #{_dnn_forward_impl.1} parent=0 // pred_check
    _
  $region31: #{_dnn_forward_impl.1} parent=0 // pred_check_branch
    %29 = sbr.rel (0) target = $region33
  $region32: #{_dnn_forward_impl.1} parent=0 // pred_region
    _
  $region33: #{_dnn_forward_impl.1} parent=0 // pred_fallthru
    _
  // Predicated region
  $region34: #{_dnn_forward_impl.1} parent=0 // pred_check
    _
  $region35: #{_dnn_forward_impl.1} parent=0 // pred_check_branch
    %31 = sbr.rel (0) target = $region37
  $region36: #{_dnn_forward_impl.1} parent=0 // pred_region
    _
  $region37: #{_dnn_forward_impl.1} parent=0 // pred_fallthru
    _
  %v32 = vld [vmem:[%s0] sm:$0xff]
  %v33 = vld [vmem:[%s1] sm:$0xff]
  %v34 = vld [vmem:[%s1 + $0x8] sm:$0xff]
  %v35 = vld [vmem:[%s2] sm:$0x1]
  %v37 = vlaneseq
  %v38 = vshrl.u32 %v37, 7
  %v39 = vsub.s32 0, %v38
  %v40 = vrot.slane %v35, %v39
  %vm42 = vcmask 130048
  %v44 = vsel %vm42, %v32, 0
  %46 = vmatprep.subr.mxu0 0.0
  %47 = vmatpush1.msra.mxu0 0.0
  %48 = vmatprep.subr.mxu0 0.0
  %49 = vmatpush1.msra.mxu0 0.0
  %50 = vmatprep.subr.mxu0 0.0
  %51 = vmatpush1.msra.mxu0 0.0
  %52 = vmatprep.subr.mxu0 0.0
  %53 = vmatpush1.msra.mxu0 0.0
  %54 = vmatprep.subr.mxu0 0.0
  %55 = vmatpush1.msra.mxu0 0.0
  %56 = vmatprep.subr.mxu0 0.0
  %57 = vmatpush1.msra.mxu0 0.0
  %58 = vmatprep.subr.mxu0 0.0
  %59 = vmatpush1.msra.mxu0 0.0
  %60 = vmatprep.subr.mxu0 0.0
  %61 = vmatpush1.msra.mxu0 0.0
  %62 = vmatprep.subr.mxu0 0.0
  %63 = vmatpush1.msra.mxu0 0.0
  %64 = vmatprep.subr.mxu0 0.0
  %65 = vmatpush1.msra.mxu0 0.0
  %66 = vmatprep.subr.mxu0 0.0
  %67 = vmatpush1.msra.mxu0 0.0
  %68 = vmatprep.subr.mxu0 0.0
  %69 = vmatpush1.msra.mxu0 0.0
  %70 = vmatprep.subr.mxu0 0.0
  %71 = vmatpush1.msra.mxu0 0.0
  %72 = vmatprep.subr.mxu0 0.0
  %73 = vmatpush1.msra.mxu0 0.0
  %74 = vmatprep.subr.mxu0 0.0
  %75 = vmatpush1.msra.mxu0 %v34
  %76 = vmatprep.subr.mxu0 0.0
  %77 = vmatpush1.msra.mxu0 %v33
  %78 = vmatprep.subr.mxu0 0.0
  %79 = vmatpush2.msra.mxu0 0.0
  %80 = vmatprep.subr.mxu0 0.0
  %81 = vmatpush2.msra.mxu0 0.0
  %82 = vmatprep.subr.mxu0 0.0
  %83 = vmatpush2.msra.mxu0 0.0
  %84 = vmatprep.subr.mxu0 0.0
  %85 = vmatpush2.msra.mxu0 0.0
  %86 = vmatprep.subr.mxu0 0.0
  %87 = vmatpush2.msra.mxu0 0.0
  %88 = vmatprep.subr.mxu0 0.0
  %89 = vmatpush2.msra.mxu0 0.0
  %90 = vmatprep.subr.mxu0 0.0
  %91 = vmatpush2.msra.mxu0 0.0
  %92 = vmatprep.subr.mxu0 0.0
  %93 = vmatpush2.msra.mxu0 0.0
  %94 = vmatprep.subr.mxu0 0.0
  %95 = vmatpush2.msra.mxu0 0.0
  %96 = vmatprep.subr.mxu0 0.0
  %97 = vmatpush2.msra.mxu0 0.0
  %98 = vmatprep.subr.mxu0 0.0
  %99 = vmatpush2.msra.mxu0 0.0
  %100 = vmatprep.subr.mxu0 0.0
  %101 = vmatpush2.msra.mxu0 0.0
  %102 = vmatprep.subr.mxu0 0.0
  %103 = vmatpush2.msra.mxu0 0.0
  %104 = vmatprep.subr.mxu0 0.0
  %105 = vmatpush2.msra.mxu0 0.0
  %106 = vmatprep.subr.mxu0 0.0
  %107 = vmatpush2.msra.mxu0 0.0
  %108 = vmatprep.subr.mxu0 0.0
  %109 = vmatpush2.msra.mxu0 0.0
  %110 = vmatprep.mubr.f32.mxu0 0.0
  %111 = vmatmul.mubr.f32.gmra.mxu0 %v44
  %v112 = vpop.f32.mrf.mxu0
  %v113 = vadd.f32 %v40, %v112
  %v114 = vpop.f32.mrf.mxu0
  %115 = vdwg.mxu0
  %v116 = vmax.f32 %v113, 0.0
  %v117 = vld [vmem:[%s3] sm:$0xff]
  %v118 = vld [vmem:[%s3 + $0x8] sm:$0xff]
  %v119 = vld [vmem:[%s3 + $0x10] sm:$0xff]
  %v120 = vld [vmem:[%s3 + $0x18] sm:$0xff]
  %v121 = vld [vmem:[%s3 + $0x20] sm:$0xff]
  %v122 = vld [vmem:[%s3 + $0x28] sm:$0xff]
  %v123 = vld [vmem:[%s3 + $0x30] sm:$0xff]
  %v124 = vld [vmem:[%s3 + $0x38] sm:$0xff]
  %v125 = vld [vmem:[%s3 + $0x40] sm:$0xff]
  %v126 = vld [vmem:[%s3 + $0x48] sm:$0xff]
  %v127 = vld [vmem:[%s3 + $0x50] sm:$0xff]
  %v128 = vld [vmem:[%s3 + $0x58] sm:$0xff]
  %v129 = vld [vmem:[%s3 + $0x60] sm:$0xff]
  %v130 = vld [vmem:[%s3 + $0x68] sm:$0xff]
  %v131 = vld [vmem:[%s3 + $0x70] sm:$0xff]
  %v132 = vld [vmem:[%s3 + $0x78] sm:$0xff]
  %v133 = vld [vmem:[%s4] sm:$0x1]
  %v135 = vlaneseq
  %v136 = vshrl.u32 %v135, 7
  %v137 = vsub.s32 0, %v136
  %v138 = vrot.slane %v133, %v137
  %140 = vmatprep.subr.mxu0 0.0
  %141 = vmatpush1.msra.mxu0 %v132
  %142 = vmatprep.subr.mxu0 0.0
  %143 = vmatpush1.msra.mxu0 %v131
  %144 = vmatprep.subr.mxu0 0.0
  %145 = vmatpush1.msra.mxu0 %v130
  %146 = vmatprep.subr.mxu0 0.0
  %147 = vmatpush1.msra.mxu0 %v129
  %148 = vmatprep.subr.mxu0 0.0
  %149 = vmatpush1.msra.mxu0 %v128
  %150 = vmatprep.subr.mxu0 0.0
  %151 = vmatpush1.msra.mxu0 %v127
  %152 = vmatprep.subr.mxu0 0.0
  %153 = vmatpush1.msra.mxu0 %v126
  %154 = vmatprep.subr.mxu0 0.0
  %155 = vmatpush1.msra.mxu0 %v125
  %156 = vmatprep.subr.mxu0 0.0
  %157 = vmatpush1.msra.mxu0 %v124
  %158 = vmatprep.subr.mxu0 0.0
  %159 = vmatpush1.msra.mxu0 %v123
  %160 = vmatprep.subr.mxu0 0.0
  %161 = vmatpush1.msra.mxu0 %v122
  %162 = vmatprep.subr.mxu0 0.0
  %163 = vmatpush1.msra.mxu0 %v121
  %164 = vmatprep.subr.mxu0 0.0
  %165 = vmatpush1.msra.mxu0 %v120
  %166 = vmatprep.subr.mxu0 0.0
  %167 = vmatpush1.msra.mxu0 %v119
  %168 = vmatprep.subr.mxu0 0.0
  %169 = vmatpush1.msra.mxu0 %v118
  %170 = vmatprep.subr.mxu0 0.0
  %171 = vmatpush1.msra.mxu0 %v117
  %172 = vmatprep.subr.mxu0 0.0
  %173 = vmatpush2.msra.mxu0 0.0
  %174 = vmatprep.subr.mxu0 0.0
  %175 = vmatpush2.msra.mxu0 0.0
  %176 = vmatprep.subr.mxu0 0.0
  %177 = vmatpush2.msra.mxu0 0.0
  %178 = vmatprep.subr.mxu0 0.0
  %179 = vmatpush2.msra.mxu0 0.0
  %180 = vmatprep.subr.mxu0 0.0
  %181 = vmatpush2.msra.mxu0 0.0
  %182 = vmatprep.subr.mxu0 0.0
  %183 = vmatpush2.msra.mxu0 0.0
  %184 = vmatprep.subr.mxu0 0.0
  %185 = vmatpush2.msra.mxu0 0.0
  %186 = vmatprep.subr.mxu0 0.0
  %187 = vmatpush2.msra.mxu0 0.0
  %188 = vmatprep.subr.mxu0 0.0
  %189 = vmatpush2.msra.mxu0 0.0
  %190 = vmatprep.subr.mxu0 0.0
  %191 = vmatpush2.msra.mxu0 0.0
  %192 = vmatprep.subr.mxu0 0.0
  %193 = vmatpush2.msra.mxu0 0.0
  %194 = vmatprep.subr.mxu0 0.0
  %195 = vmatpush2.msra.mxu0 0.0
  %196 = vmatprep.subr.mxu0 0.0
  %197 = vmatpush2.msra.mxu0 0.0
  %198 = vmatprep.subr.mxu0 0.0
  %199 = vmatpush2.msra.mxu0 0.0
  %200 = vmatprep.subr.mxu0 0.0
  %201 = vmatpush2.msra.mxu0 0.0
  %202 = vmatprep.subr.mxu0 0.0
  %203 = vmatpush2.msra.mxu0 0.0
  %204 = vmatprep.mubr.f32.mxu0 0.0
  %205 = vmatmul.mubr.f32.gmra.mxu0 %v116
  %v206 = vpop.f32.mrf.mxu0
  %v207 = vadd.f32 %v138, %v206
  %v208 = vpop.f32.mrf.mxu0
  %209 = vdwg.mxu0
  %v210 = vmax.f32 %v207, 0.0
  %v211 = vld [vmem:[%s5] sm:$0xff]
  %v212 = vld [vmem:[%s5 + $0x8] sm:$0xff]
  %v213 = vld [vmem:[%s5 + $0x10] sm:$0xff]
  %v214 = vld [vmem:[%s5 + $0x18] sm:$0xff]
  %v215 = vld [vmem:[%s5 + $0x20] sm:$0xff]
  %v216 = vld [vmem:[%s5 + $0x28] sm:$0xff]
  %v217 = vld [vmem:[%s5 + $0x30] sm:$0xff]
  %v218 = vld [vmem:[%s5 + $0x38] sm:$0xff]
  %v219 = vld [vmem:[%s5 + $0x40] sm:$0xff]
  %v220 = vld [vmem:[%s5 + $0x48] sm:$0xff]
  %v221 = vld [vmem:[%s5 + $0x50] sm:$0xff]
  %v222 = vld [vmem:[%s5 + $0x58] sm:$0xff]
  %v223 = vld [vmem:[%s5 + $0x60] sm:$0xff]
  %v224 = vld [vmem:[%s5 + $0x68] sm:$0xff]
  %v225 = vld [vmem:[%s5 + $0x70] sm:$0xff]
  %v226 = vld [vmem:[%s5 + $0x78] sm:$0xff]
  %v227 = vld [vmem:[%s6] sm:$0x1]
  %v229 = vlaneseq
  %v230 = vshrl.u32 %v229, 7
  %v231 = vsub.s32 0, %v230
  %v232 = vrot.slane %v227, %v231
  %234 = vmatprep.subr.mxu0 0.0
  %235 = vmatpush1.msra.mxu0 %v226
  %236 = vmatprep.subr.mxu0 0.0
  %237 = vmatpush1.msra.mxu0 %v225
  %238 = vmatprep.subr.mxu0 0.0
  %239 = vmatpush1.msra.mxu0 %v224
  %240 = vmatprep.subr.mxu0 0.0
  %241 = vmatpush1.msra.mxu0 %v223
  %242 = vmatprep.subr.mxu0 0.0
  %243 = vmatpush1.msra.mxu0 %v222
  %244 = vmatprep.subr.mxu0 0.0
  %245 = vmatpush1.msra.mxu0 %v221
  %246 = vmatprep.subr.mxu0 0.0
  %247 = vmatpush1.msra.mxu0 %v220
  %248 = vmatprep.subr.mxu0 0.0
  %249 = vmatpush1.msra.mxu0 %v219
  %250 = vmatprep.subr.mxu0 0.0
  %251 = vmatpush1.msra.mxu0 %v218
  %252 = vmatprep.subr.mxu0 0.0
  %253 = vmatpush1.msra.mxu0 %v217
  %254 = vmatprep.subr.mxu0 0.0
  %255 = vmatpush1.msra.mxu0 %v216
  %256 = vmatprep.subr.mxu0 0.0
  %257 = vmatpush1.msra.mxu0 %v215
  %258 = vmatprep.subr.mxu0 0.0
  %259 = vmatpush1.msra.mxu0 %v214
  %260 = vmatprep.subr.mxu0 0.0
  %261 = vmatpush1.msra.mxu0 %v213
  %262 = vmatprep.subr.mxu0 0.0
  %263 = vmatpush1.msra.mxu0 %v212
  %264 = vmatprep.subr.mxu0 0.0
  %265 = vmatpush1.msra.mxu0 %v211
  %266 = vmatprep.subr.mxu0 0.0
  %267 = vmatpush2.msra.mxu0 0.0
  %268 = vmatprep.subr.mxu0 0.0
  %269 = vmatpush2.msra.mxu0 0.0
  %270 = vmatprep.subr.mxu0 0.0
  %271 = vmatpush2.msra.mxu0 0.0
  %272 = vmatprep.subr.mxu0 0.0
  %273 = vmatpush2.msra.mxu0 0.0
  %274 = vmatprep.subr.mxu0 0.0
  %275 = vmatpush2.msra.mxu0 0.0
  %276 = vmatprep.subr.mxu0 0.0
  %277 = vmatpush2.msra.mxu0 0.0
  %278 = vmatprep.subr.mxu0 0.0
  %279 = vmatpush2.msra.mxu0 0.0
  %280 = vmatprep.subr.mxu0 0.0
  %281 = vmatpush2.msra.mxu0 0.0
  %282 = vmatprep.subr.mxu0 0.0
  %283 = vmatpush2.msra.mxu0 0.0
  %284 = vmatprep.subr.mxu0 0.0
  %285 = vmatpush2.msra.mxu0 0.0
  %286 = vmatprep.subr.mxu0 0.0
  %287 = vmatpush2.msra.mxu0 0.0
  %288 = vmatprep.subr.mxu0 0.0
  %289 = vmatpush2.msra.mxu0 0.0
  %290 = vmatprep.subr.mxu0 0.0
  %291 = vmatpush2.msra.mxu0 0.0
  %292 = vmatprep.subr.mxu0 0.0
  %293 = vmatpush2.msra.mxu0 0.0
  %294 = vmatprep.subr.mxu0 0.0
  %295 = vmatpush2.msra.mxu0 0.0
  %296 = vmatprep.subr.mxu0 0.0
  %297 = vmatpush2.msra.mxu0 0.0
  %298 = vmatprep.mubr.f32.mxu0 0.0
  %299 = vmatmul.mubr.f32.gmra.mxu0 %v210
  %v300 = vpop.f32.mrf.mxu0
  %v301 = vadd.f32 %v232, %v300
  %v302 = vpop.f32.mrf.mxu0
  %303 = vdwg.mxu0
  %v304 = vmax.f32 %v301, 0.0
  %v305 = vld [vmem:[%s7] sm:$0xff]
  %v306 = vld [vmem:[%s7 + $0x8] sm:$0xff]
  %v307 = vld [vmem:[%s7 + $0x10] sm:$0xff]
  %v308 = vld [vmem:[%s7 + $0x18] sm:$0xff]
  %v309 = vld [vmem:[%s7 + $0x20] sm:$0xff]
  %v310 = vld [vmem:[%s7 + $0x28] sm:$0xff]
  %v311 = vld [vmem:[%s7 + $0x30] sm:$0xff]
  %v312 = vld [vmem:[%s7 + $0x38] sm:$0xff]
  %v313 = vld [vmem:[%s7 + $0x40] sm:$0xff]
  %v314 = vld [vmem:[%s7 + $0x48] sm:$0xff]
  %v315 = vld [vmem:[%s7 + $0x50] sm:$0xff]
  %v316 = vld [vmem:[%s7 + $0x58] sm:$0xff]
  %v317 = vld [vmem:[%s7 + $0x60] sm:$0xff]
  %v318 = vld [vmem:[%s7 + $0x68] sm:$0xff]
  %v319 = vld [vmem:[%s7 + $0x70] sm:$0xff]
  %v320 = vld [vmem:[%s7 + $0x78] sm:$0xff]
  %v321 = vld [vmem:[%s8] sm:$0x1]
  %v323 = vlaneseq
  %v324 = vshrl.u32 %v323, 7
  %v325 = vsub.s32 0, %v324
  %v326 = vrot.slane %v321, %v325
  %328 = vmatprep.subr.mxu0 0.0
  %329 = vmatpush1.msra.mxu0 %v320
  %330 = vmatprep.subr.mxu0 0.0
  %331 = vmatpush1.msra.mxu0 %v319
  %332 = vmatprep.subr.mxu0 0.0
  %333 = vmatpush1.msra.mxu0 %v318
  %334 = vmatprep.subr.mxu0 0.0
  %335 = vmatpush1.msra.mxu0 %v317
  %336 = vmatprep.subr.mxu0 0.0
  %337 = vmatpush1.msra.mxu0 %v316
  %338 = vmatprep.subr.mxu0 0.0
  %339 = vmatpush1.msra.mxu0 %v315
  %340 = vmatprep.subr.mxu0 0.0
  %341 = vmatpush1.msra.mxu0 %v314
  %342 = vmatprep.subr.mxu0 0.0
  %343 = vmatpush1.msra.mxu0 %v313
  %344 = vmatprep.subr.mxu0 0.0
  %345 = vmatpush1.msra.mxu0 %v312
  %346 = vmatprep.subr.mxu0 0.0
  %347 = vmatpush1.msra.mxu0 %v311
  %348 = vmatprep.subr.mxu0 0.0
  %349 = vmatpush1.msra.mxu0 %v310
  %350 = vmatprep.subr.mxu0 0.0
  %351 = vmatpush1.msra.mxu0 %v309
  %352 = vmatprep.subr.mxu0 0.0
  %353 = vmatpush1.msra.mxu0 %v308
  %354 = vmatprep.subr.mxu0 0.0
  %355 = vmatpush1.msra.mxu0 %v307
  %356 = vmatprep.subr.mxu0 0.0
  %357 = vmatpush1.msra.mxu0 %v306
  %358 = vmatprep.subr.mxu0 0.0
  %359 = vmatpush1.msra.mxu0 %v305
  %360 = vmatprep.subr.mxu0 0.0
  %361 = vmatpush2.msra.mxu0 0.0
  %362 = vmatprep.subr.mxu0 0.0
  %363 = vmatpush2.msra.mxu0 0.0
  %364 = vmatprep.subr.mxu0 0.0
  %365 = vmatpush2.msra.mxu0 0.0
  %366 = vmatprep.subr.mxu0 0.0
  %367 = vmatpush2.msra.mxu0 0.0
  %368 = vmatprep.subr.mxu0 0.0
  %369 = vmatpush2.msra.mxu0 0.0
  %370 = vmatprep.subr.mxu0 0.0
  %371 = vmatpush2.msra.mxu0 0.0
  %372 = vmatprep.subr.mxu0 0.0
  %373 = vmatpush2.msra.mxu0 0.0
  %374 = vmatprep.subr.mxu0 0.0
  %375 = vmatpush2.msra.mxu0 0.0
  %376 = vmatprep.subr.mxu0 0.0
  %377 = vmatpush2.msra.mxu0 0.0
  %378 = vmatprep.subr.mxu0 0.0
  %379 = vmatpush2.msra.mxu0 0.0
  %380 = vmatprep.subr.mxu0 0.0
  %381 = vmatpush2.msra.mxu0 0.0
  %382 = vmatprep.subr.mxu0 0.0
  %383 = vmatpush2.msra.mxu0 0.0
  %384 = vmatprep.subr.mxu0 0.0
  %385 = vmatpush2.msra.mxu0 0.0
  %386 = vmatprep.subr.mxu0 0.0
  %387 = vmatpush2.msra.mxu0 0.0
  %388 = vmatprep.subr.mxu0 0.0
  %389 = vmatpush2.msra.mxu0 0.0
  %390 = vmatprep.subr.mxu0 0.0
  %391 = vmatpush2.msra.mxu0 0.0
  %392 = vmatprep.mubr.f32.mxu0 0.0
  %393 = vmatmul.mubr.f32.gmra.mxu0 %v304
  %v394 = vpop.f32.mrf.mxu0
  %v395 = vadd.f32 %v326, %v394
  %v396 = vpop.f32.mrf.mxu0
  %397 = vdwg.mxu0
  %vm398 = vcmask 261120
  %399 = vst.msk [vmem:[%s9] sm:$0xff] %vm398, %v395
  // Predicated region
  $region38: #{_dnn_forward_impl.1} parent=0 // pred_check
    _
  $region39: #{_dnn_forward_impl.1} parent=0 // pred_check_branch
    %401 = sbr.rel (0) target = $region41
  $region40: #{_dnn_forward_impl.1} parent=0 // pred_region
    _
  $region41: #{_dnn_forward_impl.1} parent=0 // pred_fallthru
    _
  // Predicated region
  $region42: #{_dnn_forward_impl.1} parent=0 // pred_check
    _
  $region43: #{_dnn_forward_impl.1} parent=0 // pred_check_branch
    %403 = sbr.rel (0) target = $region45
  $region44: #{_dnn_forward_impl.1} parent=0 // pred_region
    _
  $region45: #{_dnn_forward_impl.1} parent=0 // pred_fallthru
    _

</llo_original>
